<compile_context>
chip_gen: v6e
topology: v6e:2x2x1
jax: 0.10.0
libtpu: 0.0.40
codegen_flags: <defaults>
</compile_context>

<pallas_src>
import inspect

import jax
import jax.numpy as jnp
from jax import lax
from jax.experimental import pallas as pl
from jax.experimental.pallas import tpu as pltpu

LN_EPS = 1e-5
_INV_SQRT2 = 0.7071067811865476

# Single-buffering for grid-invariant operands, if this Pallas build supports it.
_HAS_PIPELINE_MODE = (
    hasattr(pl, "Buffered")
    and "pipeline_mode" in inspect.signature(pl.BlockSpec).parameters
)


def _const_spec(block_shape):
    """BlockSpec for an operand whose block index never changes across the grid."""
    kwargs = {}
    if _HAS_PIPELINE_MODE:
        kwargs["pipeline_mode"] = pl.Buffered(1)   # no point double-buffering it
    return pl.BlockSpec(block_shape, lambda *_: (0,) * len(block_shape), **kwargs)


def attention_pooling_kernel(
    x_ref,      # (Bt, S, H)  f32/bf16 : hidden states for this batch block
    mask_ref,   # (Bt, 1, S)  f32      : attention mask, lane-dense over S
    w1_ref,     # (H, H)      f32/bf16 : first Linear weight (applied as x @ W1)
    b1_ref,     # (1, H)      f32      : first Linear bias
    g_ref,      # (1, H)      f32      : LayerNorm gamma
    beta_ref,   # (1, H)      f32      : LayerNorm beta
    w2_ref,     # (1, H)      f32      : second Linear weight as a row
    out_ref,    # (Bt, H)     f32      : pooled embeddings (sublane-dense)
):
    bt, s, h = x_ref.shape
    x = x_ref[...]                                   # (Bt, S, H), wire dtype
    xr = x.reshape(bt * s, h)                        # layout-preserving (S % 8 == 0)

    # Linear(H, H): one big (Bt*S, H) x (H, H) MXU matmul, f32 accumulate.
    hs = jnp.dot(xr.astype(w1_ref.dtype), w1_ref[...],
                 preferred_element_type=jnp.float32) + b1_ref[...]

    # LayerNorm over the hidden dim, fused statistics (one pass: mean and E[x^2]).
    mean = jnp.mean(hs, axis=-1, keepdims=True)
    msq = jnp.mean(hs * hs, axis=-1, keepdims=True)
    inv = lax.rsqrt(msq - mean * mean + LN_EPS)
    hn = (hs - mean) * inv * g_ref[...] + beta_ref[...]

    # GELU, exact erf form (nn.GELU() default).
    act = 0.5 * hn * (1.0 + lax.erf(hn * _INV_SQRT2))

    # Linear(H, 1) as a VPU multiply + lane reduction (an N=1 MXU matmul would waste
    # 255/256 of the array).  b2 omitted: softmax is shift-invariant, so it's a no-op.
    logits = jnp.sum(act.reshape(bt, s, h) * w2_ref[...], axis=-1)   # (Bt, S)

    # Mask + softmax over the sequence (lane) axis.  Exact divide for tight parity
    # with torch.softmax (the approx EUP reciprocal was off by ~3e-3 per row).
    # NOTE: a fully-masked row gives all -inf logits -> NaN, matching the PyTorch module.
    mask = mask_ref[...][:, 0, :]                    # (Bt, S)
    logits = jnp.where(mask != 0.0, logits, -jnp.inf)
    m = jnp.max(logits, axis=-1, keepdims=True)
    e = jnp.exp(logits - m)
    w = e / jnp.sum(e, axis=-1, keepdims=True)       # (Bt, S)

    # Weighted sum over the sequence on the VPU (broadcast-mul + S reduce), f32 acc.
    pooled = jnp.sum(w[:, :, None] * x.astype(jnp.float32), axis=1)  # (Bt, H)
    out_ref[...] = pooled.astype(out_ref.dtype)


def _choose_block_b(B, S, H, x_bytes, w1_bytes, *, w1_copies=1,
                    target_rows=1024, vmem_budget=40 << 20):
    """Largest batch block (multiple of 8, or B itself) whose per-step VMEM footprint
    (resident W1 + double-buffered x/mask/out blocks + ~3 live f32 intermediates)
    fits the budget, aiming for ~target_rows MXU rows per grid step."""
    def step_bytes(bb):
        rows = bb * S
        return (w1_copies * H * H * w1_bytes        # W1 (x2 if Buffered(1) unsupported)
                + 2 * rows * H * x_bytes            # x block, double-buffered
                + 3 * rows * H * 4                  # hs / hn / act live f32
                + 2 * bb * (S + H) * 4              # mask + out blocks
                + 8 * H * 4)                        # b1 / gamma / beta / w2 rows

    if B <= 8:
        return B                                    # block must equal B or be 8-aligned
    cands = sorted(set(list(range(8, B, 8)) + [B]))
    fits = [bb for bb in cands if step_bytes(bb) <= vmem_budget]
    if not fits:
        return 8
    good = [bb for bb in fits if bb * S <= max(target_rows, 8 * S)]
    pick = good[-1] if good else fits[0]
    if pick == B and B >= 16:
        smaller = [bb for bb in (good or fits) if bb < B]
        if smaller:
            pick = smaller[-1]                      # >= 2 grid steps: keep both v7x TCs busy
    return pick


def attention_pooling(last_hidden_state, attention_mask, params, *,
                      block_b=None, matmul_dtype=jnp.float32,
                      vmem_limit_bytes=48 << 20):
    """last_hidden_state: (B, S, H), attention_mask: (B, S) -> (B, H) float32."""
    B, S, H = last_hidden_state.shape
    x = last_hidden_state                            # keep wire dtype; cast in-kernel
    mask = attention_mask.astype(jnp.float32).reshape(B, 1, S)

    # Pad the sequence to a multiple of 8 (mask = 0 neutralizes the padding).
    Sp = int(pl.cdiv(S, 8)) * 8
    if Sp != S:
        x = jnp.pad(x, ((0, 0), (0, Sp - S), (0, 0)))
        mask = jnp.pad(mask, ((0, 0), (0, 0), (0, Sp - S)))

    w1 = params["w1"].astype(matmul_dtype)                    # (H, H)
    b1 = params["b1"].reshape(1, H).astype(jnp.float32)
    gamma = params["gamma"].reshape(1, H).astype(jnp.float32)
    beta = params["beta"].reshape(1, H).astype(jnp.float32)
    w2 = params["w2"].reshape(1, H).astype(jnp.float32)       # row form for VPU projection
    # params["b2"] is intentionally unused: softmax(logit + b2) == softmax(logit).

    if block_b is None:
        block_b = _choose_block_b(
            B, Sp, H,
            jnp.dtype(x.dtype).itemsize, jnp.dtype(matmul_dtype).itemsize,
            w1_copies=1 if _HAS_PIPELINE_MODE else 2,
            vmem_budget=max(vmem_limit_bytes - (8 << 20), 8 << 20))

    # Pad the batch so block_b tiles it exactly (pad rows: mask = 1, x = 0 -> finite,
    # discarded on the way out).
    Bp = int(pl.cdiv(B, block_b)) * block_b
    if Bp != B:
        x = jnp.pad(x, ((0, Bp - B), (0, 0), (0, 0)))
        mask = jnp.pad(mask, ((0, Bp - B), (0, 0), (0, 0)), constant_values=1.0)
    grid = (Bp // block_b,)

    out = pl.pallas_call(
        attention_pooling_kernel,
        out_shape=jax.ShapeDtypeStruct((Bp, H), jnp.float32),
        grid_spec=pltpu.PrefetchScalarGridSpec(
            num_scalar_prefetch=0,
            grid=grid,
            in_specs=[
                pl.BlockSpec((block_b, Sp, H), lambda i: (i, 0, 0)),   # x
                pl.BlockSpec((block_b, 1, Sp), lambda i: (i, 0, 0)),   # mask (lane-dense)
                _const_spec((H, H)),                                   # W1 (single-buffered)
                _const_spec((1, H)),                                   # b1
                _const_spec((1, H)),                                   # gamma
                _const_spec((1, H)),                                   # beta
                _const_spec((1, H)),                                   # W2 row
            ],
            out_specs=pl.BlockSpec((block_b, H), lambda i: (i, 0)),    # sublane-dense out
        ),
        compiler_params=pltpu.CompilerParams(
            dimension_semantics=("parallel",),
            vmem_limit_bytes=vmem_limit_bytes,
        ),
    )(x, mask, w1, b1, gamma, beta, w2)
    return out[:B]


def attention_pooling_ref(last_hidden_state, attention_mask, params):
    """Pure-JAX reference mirroring the PyTorch forward exactly."""
    x = last_hidden_state.astype(jnp.float32)
    h = x @ params["w1"] + params["b1"]
    mean = jnp.mean(h, axis=-1, keepdims=True)
    var = jnp.mean((h - mean) ** 2, axis=-1, keepdims=True)
    hn = (h - mean) / jnp.sqrt(var + LN_EPS)
    hn = hn * params["gamma"] + params["beta"]
    act = jax.nn.gelu(hn, approximate=False)
    w = act @ params["w2"] + params["b2"]                      # (B, S, 1)
    w = jnp.where(attention_mask[..., None] == 0, -jnp.inf, w)
    w = jax.nn.softmax(w, axis=1)
    return jnp.sum(w * x, axis=1)


def init_params(key, hidden):
    k1, k2, k3, k4 = jax.random.split(key, 4)
    scale = 1.0 / jnp.sqrt(hidden)
    return {
        "w1": jax.random.uniform(k1, (hidden, hidden), jnp.float32, -scale, scale),
        "b1": jax.random.uniform(k2, (hidden,), jnp.float32, -scale, scale),
        "gamma": jnp.ones((hidden,), jnp.float32),
        "beta": jnp.zeros((hidden,), jnp.float32),
        "w2": jax.random.uniform(k3, (hidden, 1), jnp.float32, -scale, scale),
        "b2": jax.random.uniform(k4, (1,), jnp.float32, -scale, scale),
    }


if __name__ == "__main__":
    B, S, H = 2, 8, 32
    key = jax.random.PRNGKey(0)
    kx, kp = jax.random.split(key)

    last_hidden_state = jax.random.normal(kx, (B, S, H), jnp.float32)
    # second sequence has its last 3 positions padded out
    attention_mask = jnp.array([[1] * S, [1] * (S - 3) + [0] * 3], dtype=jnp.int32)
    params = init_params(kp, H)

    ref = attention_pooling_ref(last_hidden_state, attention_mask, params)

    # f32 MXU path: exact-divide softmax, should match the reference tightly.
    out = attention_pooling(last_hidden_state, attention_mask, params)
    out = jax.block_until_ready(out)
    assert out.shape == (B, H)
    assert jnp.allclose(out, ref, atol=1e-3, rtol=1e-3), (out, ref)

    # bf16 MXU path (W1 in bf16, x cast in-kernel just before the dot): wider tolerance.
    out_bf16 = attention_pooling(last_hidden_state, attention_mask, params,
                                 matmul_dtype=jnp.bfloat16)
    out_bf16 = jax.block_until_ready(out_bf16)
    assert out_bf16.shape == (B, H)
    assert jnp.allclose(out_bf16, ref, atol=5e-2, rtol=5e-2), (out_bf16, ref)

    print("KERNEL_OK")
</pallas_src>

<mosaic_0001>
module attributes {stable_mosaic.version = 11 : i64} {
  func.func @attention_pooling_kernel(%arg0: i32, %arg1: memref<2x8x32xf32, #tpu.memory_space<vmem>>, %arg2: memref<2x1x8xf32, #tpu.memory_space<vmem>>, %arg3: memref<32x32xf32, #tpu.memory_space<vmem>>, %arg4: memref<1x32xf32, #tpu.memory_space<vmem>>, %arg5: memref<1x32xf32, #tpu.memory_space<vmem>>, %arg6: memref<1x32xf32, #tpu.memory_space<vmem>>, %arg7: memref<1x32xf32, #tpu.memory_space<vmem>>, %arg8: memref<2x32xf32, #tpu.memory_space<vmem>>) attributes {dimension_semantics = [#tpu.dimension_semantics<parallel>], iteration_bounds = array<i64: 1>, scalar_prefetch = 0 : i64, scratch_operands = 0 : i64, tpu.core_type = #tpu.core_type<tc>, window_params = [{transform_indices = @transform_0, window_bounds = array<i64: 2, 8, 32>}, {transform_indices = @transform_1, window_bounds = array<i64: 2, 1, 8>}, {pipeline_mode = #tpu.pipeline_mode<synchronous>, transform_indices = @transform_2, window_bounds = array<i64: 32, 32>}, {pipeline_mode = #tpu.pipeline_mode<synchronous>, transform_indices = @transform_3, window_bounds = array<i64: 1, 32>}, {pipeline_mode = #tpu.pipeline_mode<synchronous>, transform_indices = @transform_4, window_bounds = array<i64: 1, 32>}, {pipeline_mode = #tpu.pipeline_mode<synchronous>, transform_indices = @transform_5, window_bounds = array<i64: 1, 32>}, {pipeline_mode = #tpu.pipeline_mode<synchronous>, transform_indices = @transform_6, window_bounds = array<i64: 1, 32>}, {transform_indices = @transform_7, window_bounds = array<i64: 2, 32>}]} {
    %c0 = arith.constant 0 : index
    %c0_0 = arith.constant 0 : index
    %c0_1 = arith.constant 0 : index
    %0 = vector.load %arg1[%c0, %c0_0, %c0_1] : memref<2x8x32xf32, #tpu.memory_space<vmem>>, vector<2x8x32xf32>
    %1 = vector.shape_cast %0 : vector<2x8x32xf32> to vector<16x32xf32>
    %c0_2 = arith.constant 0 : index
    %c0_3 = arith.constant 0 : index
    %2 = vector.load %arg3[%c0_2, %c0_3] : memref<32x32xf32, #tpu.memory_space<vmem>>, vector<32x32xf32>
    %cst = arith.constant dense<0.000000e+00> : vector<16x32xf32>
    %3 = tpu.matmul %1, %2, %cst {dimension_numbers = #tpu.dot_dimension_numbers<[1], [0], [0], [1], [0, 0, 1, 1], [], []>} : vector<16x32xf32>, vector<32x32xf32>, vector<16x32xf32> -> vector<16x32xf32>
    %c0_4 = arith.constant 0 : index
    %c0_5 = arith.constant 0 : index
    %4 = vector.load %arg4[%c0_4, %c0_5] : memref<1x32xf32, #tpu.memory_space<vmem>>, vector<1x32xf32>
    %5 = vector.broadcast %4 : vector<1x32xf32> to vector<16x32xf32>
    %6 = arith.addf %3, %5 : vector<16x32xf32>
    %cst_6 = arith.constant dense<0.000000e+00> : vector<16xf32>
    %7 = vector.multi_reduction <add>, %6, %cst_6 [1] : vector<16x32xf32> to vector<16xf32>
    %8 = vector.shape_cast %7 : vector<16xf32> to vector<16x1xf32>
    %cst_7 = arith.constant 3.200000e+01 : f32
    %9 = vector.broadcast %cst_7 : f32 to vector<16x1xf32>
    %10 = arith.divf %8, %9 : vector<16x1xf32>
    %11 = arith.mulf %6, %6 : vector<16x32xf32>
    %cst_8 = arith.constant dense<0.000000e+00> : vector<16xf32>
    %12 = vector.multi_reduction <add>, %11, %cst_8 [1] : vector<16x32xf32> to vector<16xf32>
    %13 = vector.shape_cast %12 : vector<16xf32> to vector<16x1xf32>
    %cst_9 = arith.constant 3.200000e+01 : f32
    %14 = vector.broadcast %cst_9 : f32 to vector<16x1xf32>
    %15 = arith.divf %13, %14 : vector<16x1xf32>
    %16 = arith.mulf %10, %10 : vector<16x1xf32>
    %17 = arith.subf %15, %16 : vector<16x1xf32>
    %cst_10 = arith.constant 9.99999974E-6 : f32
    %18 = vector.broadcast %cst_10 : f32 to vector<16x1xf32>
    %19 = arith.addf %17, %18 : vector<16x1xf32>
    %20 = math.rsqrt %19 : vector<16x1xf32>
    %21 = vector.broadcast %10 : vector<16x1xf32> to vector<16x32xf32>
    %22 = arith.subf %6, %21 : vector<16x32xf32>
    %23 = vector.broadcast %20 : vector<16x1xf32> to vector<16x32xf32>
    %24 = arith.mulf %22, %23 : vector<16x32xf32>
    %c0_11 = arith.constant 0 : index
    %c0_12 = arith.constant 0 : index
    %25 = vector.load %arg5[%c0_11, %c0_12] : memref<1x32xf32, #tpu.memory_space<vmem>>, vector<1x32xf32>
    %26 = vector.broadcast %25 : vector<1x32xf32> to vector<16x32xf32>
    %27 = arith.mulf %24, %26 : vector<16x32xf32>
    %c0_13 = arith.constant 0 : index
    %c0_14 = arith.constant 0 : index
    %28 = vector.load %arg6[%c0_13, %c0_14] : memref<1x32xf32, #tpu.memory_space<vmem>>, vector<1x32xf32>
    %29 = vector.broadcast %28 : vector<1x32xf32> to vector<16x32xf32>
    %30 = arith.addf %27, %29 : vector<16x32xf32>
    %cst_15 = arith.constant 5.000000e-01 : f32
    %31 = vector.broadcast %cst_15 : f32 to vector<16x32xf32>
    %32 = arith.mulf %31, %30 : vector<16x32xf32>
    %cst_16 = arith.constant 0.707106769 : f32
    %33 = vector.broadcast %cst_16 : f32 to vector<16x32xf32>
    %34 = arith.mulf %30, %33 : vector<16x32xf32>
    %35 = math.erf %34 : vector<16x32xf32>
    %cst_17 = arith.constant 1.000000e+00 : f32
    %36 = vector.broadcast %cst_17 : f32 to vector<16x32xf32>
    %37 = arith.addf %36, %35 : vector<16x32xf32>
    %38 = arith.mulf %32, %37 : vector<16x32xf32>
    %39 = vector.shape_cast %38 : vector<16x32xf32> to vector<2x8x32xf32>
    %c0_18 = arith.constant 0 : index
    %c0_19 = arith.constant 0 : index
    %40 = vector.load %arg7[%c0_18, %c0_19] : memref<1x32xf32, #tpu.memory_space<vmem>>, vector<1x32xf32>
    %41 = vector.shape_cast %40 : vector<1x32xf32> to vector<1x1x32xf32>
    %42 = vector.broadcast %41 : vector<1x1x32xf32> to vector<2x8x32xf32>
    %43 = arith.mulf %39, %42 : vector<2x8x32xf32>
    %cst_20 = arith.constant dense<0.000000e+00> : vector<2x8xf32>
    %44 = vector.multi_reduction <add>, %43, %cst_20 [2] : vector<2x8x32xf32> to vector<2x8xf32>
    %c0_21 = arith.constant 0 : index
    %c0_22 = arith.constant 0 : index
    %c0_23 = arith.constant 0 : index
    %45 = vector.load %arg2[%c0_21, %c0_22, %c0_23] : memref<2x1x8xf32, #tpu.memory_space<vmem>>, vector<2x1x8xf32>
    %46 = vector.shape_cast %45 : vector<2x1x8xf32> to vector<2x8xf32>
    %cst_24 = arith.constant 0.000000e+00 : f32
    %47 = vector.broadcast %cst_24 : f32 to vector<2x8xf32>
    %48 = arith.cmpf one, %46, %47 : vector<2x8xf32>
    %cst_25 = arith.constant 0xFF800000 : f32
    %49 = vector.broadcast %cst_25 : f32 to vector<2x8xf32>
    %50 = arith.select %48, %44, %49 : vector<2x8xi1>, vector<2x8xf32>
    %cst_26 = arith.constant dense<0xFF800000> : vector<2xf32>
    %51 = vector.multi_reduction <maximumf>, %50, %cst_26 [1] : vector<2x8xf32> to vector<2xf32>
    %52 = vector.shape_cast %51 : vector<2xf32> to vector<2x1xf32>
    %53 = vector.broadcast %52 : vector<2x1xf32> to vector<2x8xf32>
    %54 = arith.subf %50, %53 : vector<2x8xf32>
    %55 = math.exp %54 : vector<2x8xf32>
    %cst_27 = arith.constant dense<0.000000e+00> : vector<2xf32>
    %56 = vector.multi_reduction <add>, %55, %cst_27 [1] : vector<2x8xf32> to vector<2xf32>
    %57 = vector.shape_cast %56 : vector<2xf32> to vector<2x1xf32>
    %58 = vector.broadcast %57 : vector<2x1xf32> to vector<2x8xf32>
    %59 = arith.divf %55, %58 : vector<2x8xf32>
    %60 = vector.shape_cast %59 : vector<2x8xf32> to vector<2x8x1xf32>
    %61 = vector.broadcast %60 : vector<2x8x1xf32> to vector<2x8x32xf32>
    %62 = arith.mulf %61, %0 : vector<2x8x32xf32>
    %cst_28 = arith.constant dense<0.000000e+00> : vector<2x32xf32>
    %63 = vector.multi_reduction <add>, %62, %cst_28 [1] : vector<2x8x32xf32> to vector<2x32xf32>
    %c0_29 = arith.constant 0 : index
    %c0_30 = arith.constant 0 : index
    %64 = vector.load %arg8[%c0_29, %c0_30] : memref<2x32xf32, #tpu.memory_space<vmem>>, vector<2x32xf32>
    tpu.vector_store %arg8[%c0_29, %c0_30], %63 {strides = array<i32>} : memref<2x32xf32, #tpu.memory_space<vmem>>, vector<2x32xf32>,
    return
  }
  func.func @transform_0(%arg0: i32) -> (i32, i32, i32) {
    %c0_i32 = arith.constant 0 : i32
    %c0_i32_0 = arith.constant 0 : i32
    %c0_i32_1 = arith.constant 0 : i32
    return %arg0, %c0_i32, %c0_i32_0 : i32, i32, i32
  }
  func.func @transform_1(%arg0: i32) -> (i32, i32, i32) {
    %c0_i32 = arith.constant 0 : i32
    %c0_i32_0 = arith.constant 0 : i32
    %c0_i32_1 = arith.constant 0 : i32
    return %arg0, %c0_i32, %c0_i32_0 : i32, i32, i32
  }
  func.func @transform_2(%arg0: i32) -> (i32, i32) {
    %c0_i32 = arith.constant 0 : i32
    %c0_i32_0 = arith.constant 0 : i32
    %c0_i32_1 = arith.constant 0 : i32
    return %c0_i32, %c0_i32_0 : i32, i32
  }
  func.func @transform_3(%arg0: i32) -> (i32, i32) {
    %c0_i32 = arith.constant 0 : i32
    %c0_i32_0 = arith.constant 0 : i32
    %c0_i32_1 = arith.constant 0 : i32
    return %c0_i32, %c0_i32_0 : i32, i32
  }
  func.func @transform_4(%arg0: i32) -> (i32, i32) {
    %c0_i32 = arith.constant 0 : i32
    %c0_i32_0 = arith.constant 0 : i32
    %c0_i32_1 = arith.constant 0 : i32
    return %c0_i32, %c0_i32_0 : i32, i32
  }
  func.func @transform_5(%arg0: i32) -> (i32, i32) {
    %c0_i32 = arith.constant 0 : i32
    %c0_i32_0 = arith.constant 0 : i32
    %c0_i32_1 = arith.constant 0 : i32
    return %c0_i32, %c0_i32_0 : i32, i32
  }
  func.func @transform_6(%arg0: i32) -> (i32, i32) {
    %c0_i32 = arith.constant 0 : i32
    %c0_i32_0 = arith.constant 0 : i32
    %c0_i32_1 = arith.constant 0 : i32
    return %c0_i32, %c0_i32_0 : i32, i32
  }
  func.func @transform_7(%arg0: i32) -> (i32, i32) {
    %c0_i32 = arith.constant 0 : i32
    %c0_i32_0 = arith.constant 0 : i32
    return %arg0, %c0_i32 : i32, i32
  }
}

</mosaic_0001>

<llo_original>
// kernel: tpu_custom_call.1
$region0: #{tpu_custom_call.1}
  #allocation0 [shape = 'u32[]', space=smem, size = 0x4, offset = 0x4, fixed_abs, tag = 'smem constant byte address 0x4 - core index']
  #allocation1 [shape = 'u32[144,128]{1,0:T(1,128)}', space=vmem, size = 0x12000, scoped, tag = 'internal scratch']
  %s0 = inlined_call_operand.hbm [shape: f32[2,8,32], index: 0, kind: input, shape index: {}]
  %s1 = inlined_call_operand.hbm [shape: f32[2,1,8], index: 1, kind: input, shape index: {}]
  %s2 = inlined_call_operand.hbm [shape: f32[32,32], index: 2, kind: input, shape index: {}]
  %s3 = inlined_call_operand.vmem [shape: f32[1,32], index: 3, kind: input, shape index: {}]
  %s4 = inlined_call_operand.vmem [shape: f32[1,32], index: 4, kind: input, shape index: {}]
  %s5 = inlined_call_operand.vmem [shape: f32[1,32], index: 5, kind: input, shape index: {}]
  %s6 = inlined_call_operand.vmem [shape: f32[1,32], index: 6, kind: input, shape index: {}]
  %s7 = inlined_call_operand.hbm [shape: f32[2,32], index: 7, kind: output, shape index: {}]
  %s8 = sld [smem:[#allocation0]]
  $region50: #{tpu_custom_call.1} parent=0
    _
  %s10 = ssub.s32 1, %s8
  %s11 = scalar_select 0, %s10, %s8
  $region1: #{tpu_custom_call.1} parent=0
    #allocation2 [shape = 'u8[8192]{0}', space=vmem, size = 0x2000, scoped, tag = 'input window, operand 0, single buffered']
    #allocation3 [shape = 's32[1]{0}', space=sflag, size = 0x4, scoped, tag = 'scoped memory for tpu_custom_call.1']
    #allocation4 [shape = 's32[1]{0}', space=sflag, size = 0x4, scoped, tag = 'scoped memory for tpu_custom_call.1']
    #allocation5 [shape = 'u8[1024]{0}', space=vmem, size = 0x400, scoped, tag = 'input window, operand 1, single buffered']
    #allocation6 [shape = 's32[1]{0}', space=sflag, size = 0x4, scoped, tag = 'scoped memory for tpu_custom_call.1']
    #allocation7 [shape = 'u8[16384]{0}', space=vmem, size = 0x4000, scoped, tag = 'input window, operand 2, single buffered']
    #allocation8 [shape = 'u8[1024]{0}', space=vmem, size = 0x400, scoped, tag = 'output window, operand 0, single buffered']
    %12 = vsyncpa [#allocation3], 0
    %13 = vsyncpa [#allocation6], 0
    %14 = vsyncpa [#allocation4], 0
    // Predicated region
    $region2: #{tpu_custom_call.1} parent=1 // pred_check
      _
    $region3: #{tpu_custom_call.1} parent=1 // pred_check_branch
      %16 = sbr.rel (0) target = $region5
    $region4: #{tpu_custom_call.1} parent=1 // pred_region
      %s18 = ssub.s32 256, 256
      %19 = vsyncadd [#allocation3], %s18
      %s20 = sshll.u32 [#allocation2], 4
      %s21 = int_to_ptr.vmem [resolvable:$true] %s20
      %26 = dma.hbm_to_vmem [thread:$0]  %s0, 256, %s21, [#allocation3], 128, 128, 8
    $region5: #{tpu_custom_call.1} parent=1 // pred_fallthru
      _
    // Predicated region
    $region6: #{tpu_custom_call.1} parent=1 // pred_check
      _
    $region7: #{tpu_custom_call.1} parent=1 // pred_check_branch
      %28 = sbr.rel (0) target = $region9
    $region8: #{tpu_custom_call.1} parent=1 // pred_region
      %s30 = ssub.s32 32, 32
      %31 = vsyncadd [#allocation6], %s30
      %s32 = sshll.u32 [#allocation5], 4
      %s33 = int_to_ptr.vmem [resolvable:$true] %s32
      %38 = dma.hbm_to_vmem [thread:$0]  %s1, 32, %s33, [#allocation6], 16, 16, 1
    $region9: #{tpu_custom_call.1} parent=1 // pred_fallthru
      _
    // Predicated region
    $region10: #{tpu_custom_call.1} parent=1 // pred_check
      _
    $region11: #{tpu_custom_call.1} parent=1 // pred_check_branch
      %40 = sbr.rel (0) target = $region13
    $region12: #{tpu_custom_call.1} parent=1 // pred_region
      %s42 = ssub.s32 512, 512
      %43 = vsyncadd [#allocation6], %s42
      %s44 = sshll.u32 [#allocation7], 4
      %s45 = int_to_ptr.vmem [resolvable:$true] %s44
      %50 = dma.hbm_to_vmem [thread:$0]  %s2, 512, %s45, [#allocation6], 128, 128, 8
    $region13: #{tpu_custom_call.1} parent=1 // pred_fallthru
      _
    // Predicated region
    $region14: #{tpu_custom_call.1} parent=1 // pred_check
      _
    $region15: #{tpu_custom_call.1} parent=1 // pred_check_branch
      %52 = sbr.rel (0) target = $region17
    $region16: #{tpu_custom_call.1} parent=1 // pred_region
      _
    $region17: #{tpu_custom_call.1} parent=1 // pred_fallthru
      _
    // Predicated region
    $region18: #{tpu_custom_call.1} parent=1 // pred_check
      _
    $region19: #{tpu_custom_call.1} parent=1 // pred_check_branch
      %54 = sbr.rel (0) target = $region21
    $region20: #{tpu_custom_call.1} parent=1 // pred_region
      _
    $region21: #{tpu_custom_call.1} parent=1 // pred_fallthru
      _
    // Predicated region
    $region22: #{tpu_custom_call.1} parent=1 // pred_check
      _
    $region23: #{tpu_custom_call.1} parent=1 // pred_check_branch
      %56 = sbr.rel (0) target = $region25
    $region24: #{tpu_custom_call.1} parent=1 // pred_region
      _
    $region25: #{tpu_custom_call.1} parent=1 // pred_fallthru
      _
    // Predicated region
    $region26: #{tpu_custom_call.1} parent=1 // pred_check
      _
    $region27: #{tpu_custom_call.1} parent=1 // pred_check_branch
      %58 = sbr.rel (0) target = $region29
    $region28: #{tpu_custom_call.1} parent=1 // pred_region
      _
    $region29: #{tpu_custom_call.1} parent=1 // pred_fallthru
      _
    // Predicated region
    $region30: #{tpu_custom_call.1} parent=1 // pred_check
      _
    $region31: #{tpu_custom_call.1} parent=1 // pred_check_branch
      %60 = sbr.rel (0) target = $region33
    $region32: #{tpu_custom_call.1} parent=1 // pred_region
      %61 = dma.done [#allocation3], 256
    $region33: #{tpu_custom_call.1} parent=1 // pred_fallthru
      _
    // Predicated region
    $region34: #{tpu_custom_call.1} parent=1 // pred_check
      _
    $region35: #{tpu_custom_call.1} parent=1 // pred_check_branch
      %63 = sbr.rel (0) target = $region37
    $region36: #{tpu_custom_call.1} parent=1 // pred_region
      %64 = dma.done [#allocation6], 32
    $region37: #{tpu_custom_call.1} parent=1 // pred_fallthru
      _
    // Predicated region
    $region38: #{tpu_custom_call.1} parent=1 // pred_check
      _
    $region39: #{tpu_custom_call.1} parent=1 // pred_check_branch
      %66 = sbr.rel (0) target = $region41
    $region40: #{tpu_custom_call.1} parent=1 // pred_region
      %67 = dma.done [#allocation6], 512
    $region41: #{tpu_custom_call.1} parent=1 // pred_fallthru
      _
    %v68 = vld [vmem:[#allocation2] sm:$0xff]
    %v69 = vld [vmem:[#allocation2 + $0x8] sm:$0xff]
    %v70 = vld [vmem:[#allocation7] sm:$0xff]
    %v71 = vld [vmem:[#allocation7 + $0x8] sm:$0xff]
    %v72 = vld [vmem:[#allocation7 + $0x10] sm:$0xff]
    %v73 = vld [vmem:[#allocation7 + $0x18] sm:$0xff]
    %v74 = vld [vmem:[%s3] sm:$0x1]
    %v76 = vlaneseq
    %v77 = vshrl.u32 %v76, 7
    %v78 = vsub.s32 0, %v77
    %v79 = vrot.slane %v74, %v78
    %vm81 = vcmask 261120
    %v83 = vsel %vm81, %v68, 0
    %v86 = vsel %vm81, %v69, 0
    %88 = vmatprep.subr.mxu0 0.0
    %89 = vmatpush1.msra.mxu0 0.0
    %90 = vmatprep.subr.mxu0 0.0
    %91 = vmatpush1.msra.mxu0 0.0
    %92 = vmatprep.subr.mxu0 0.0
    %93 = vmatpush1.msra.mxu0 0.0
    %94 = vmatprep.subr.mxu0 0.0
    %95 = vmatpush1.msra.mxu0 0.0
    %96 = vmatprep.subr.mxu0 0.0
    %97 = vmatpush1.msra.mxu0 0.0
    %98 = vmatprep.subr.mxu0 0.0
    %99 = vmatpush1.msra.mxu0 0.0
    %100 = vmatprep.subr.mxu0 0.0
    %101 = vmatpush1.msra.mxu0 0.0
    %102 = vmatprep.subr.mxu0 0.0
    %103 = vmatpush1.msra.mxu0 0.0
    %104 = vmatprep.subr.mxu0 0.0
    %105 = vmatpush1.msra.mxu0 0.0
    %106 = vmatprep.subr.mxu0 0.0
    %107 = vmatpush1.msra.mxu0 0.0
    %108 = vmatprep.subr.mxu0 0.0
    %109 = vmatpush1.msra.mxu0 0.0
    %110 = vmatprep.subr.mxu0 0.0
    %111 = vmatpush1.msra.mxu0 0.0
    %112 = vmatprep.subr.mxu0 0.0
    %113 = vmatpush1.msra.mxu0 %v73
    %114 = vmatprep.subr.mxu0 0.0
    %115 = vmatpush1.msra.mxu0 %v72
    %116 = vmatprep.subr.mxu0 0.0
    %117 = vmatpush1.msra.mxu0 %v71
    %118 = vmatprep.subr.mxu0 0.0
    %119 = vmatpush1.msra.mxu0 %v70
    %120 = vmatprep.subr.mxu0 0.0
    %121 = vmatpush2.msra.mxu0 0.0
    %122 = vmatprep.subr.mxu0 0.0
    %123 = vmatpush2.msra.mxu0 0.0
    %124 = vmatprep.subr.mxu0 0.0
    %125 = vmatpush2.msra.mxu0 0.0
    %126 = vmatprep.subr.mxu0 0.0
    %127 = vmatpush2.msra.mxu0 0.0
    %128 = vmatprep.subr.mxu0 0.0
    %129 = vmatpush2.msra.mxu0 0.0
    %130 = vmatprep.subr.mxu0 0.0
    %131 = vmatpush2.msra.mxu0 0.0
    %132 = vmatprep.subr.mxu0 0.0
    %133 = vmatpush2.msra.mxu0 0.0
    %134 = vmatprep.subr.mxu0 0.0
    %135 = vmatpush2.msra.mxu0 0.0
    %136 = vmatprep.subr.mxu0 0.0
    %137 = vmatpush2.msra.mxu0 0.0
    %138 = vmatprep.subr.mxu0 0.0
    %139 = vmatpush2.msra.mxu0 0.0
    %140 = vmatprep.subr.mxu0 0.0
    %141 = vmatpush2.msra.mxu0 0.0
    %142 = vmatprep.subr.mxu0 0.0
    %143 = vmatpush2.msra.mxu0 0.0
    %144 = vmatprep.subr.mxu0 0.0
    %145 = vmatpush2.msra.mxu0 0.0
    %146 = vmatprep.subr.mxu0 0.0
    %147 = vmatpush2.msra.mxu0 0.0
    %148 = vmatprep.subr.mxu0 0.0
    %149 = vmatpush2.msra.mxu0 0.0
    %150 = vmatprep.subr.mxu0 0.0
    %151 = vmatpush2.msra.mxu0 0.0
    %152 = vmatprep.mubr.f32.mxu0 0.0
    %153 = vmatmul.mubr.f32.gmra.mxu0 %v83
    %v154 = vpop.f32.mrf.mxu0
    %v155 = vadd.f32 %v79, %v154
    %v156 = vpop.f32.mrf.mxu0
    %157 = vmatprep.mubr.f32.mxu0 0.0
    %158 = vmatmul.mubr.f32.gmra.mxu0 %v86
    %v159 = vpop.f32.mrf.mxu0
    %v160 = vadd.f32 %v79, %v159
    %v161 = vpop.f32.mrf.mxu0
    %162 = vdwg.mxu0
    %v163 = vsel %vm81, %v155, 0.0
    %164 = vadd.xlane.f32.xlu0 %v163
    %v165 = vpop.xlane.xlu0 %164
    %v166 = vsel %vm81, %v160, 0.0
    %167 = vadd.xlane.f32.xlu0 %v166
    %v168 = vpop.xlane.xlu0 %167
    %v169 = vrcp.pop 32.0
    %v170 = vmul.f32 %v165, %v169
    %v171 = vmul.f32 %v168, %v169
    %v172 = vmul.f32 %v155, %v155
    %v173 = vmul.f32 %v160, %v160
    %v174 = vsel %vm81, %v172, 0.0
    %175 = vadd.xlane.f32.xlu0 %v174
    %v176 = vpop.xlane.xlu0 %175
    %v177 = vsel %vm81, %v173, 0.0
    %178 = vadd.xlane.f32.xlu0 %v177
    %v179 = vpop.xlane.xlu0 %178
    %v180 = vmul.f32 %v176, %v169
    %v181 = vmul.f32 %v179, %v169
    %v182 = vmul.f32 %v170, %v170
    %v183 = vmul.f32 %v171, %v171
    %v184 = vsub.f32 %v180, %v182
    %v185 = vsub.f32 %v181, %v183
    %v186 = vadd.f32 %v184, 1e-05
    %v187 = vadd.f32 %v185, 1e-05
    %v188 = vrsqrt.pop %v186
    %v189 = vrsqrt.pop %v187
    %v190 = vsub.f32 %v155, %v170
    %v191 = vsub.f32 %v160, %v171
    %v192 = vmul.f32 %v190, %v188
    %v193 = vmul.f32 %v191, %v189
    %v194 = vld [vmem:[%s4] sm:$0x1]
    %v196 = vlaneseq
    %v197 = vshrl.u32 %v196, 7
    %v198 = vsub.s32 0, %v197
    %v199 = vrot.slane %v194, %v198
    %v201 = vmul.f32 %v192, %v199
    %v202 = vmul.f32 %v193, %v199
    %v203 = vld [vmem:[%s5] sm:$0x1]
    %v205 = vlaneseq
    %v206 = vshrl.u32 %v205, 7
    %v207 = vsub.s32 0, %v206
    %v208 = vrot.slane %v203, %v207
    %v210 = vadd.f32 %v201, %v208
    %v211 = vadd.f32 %v202, %v208
    %v212 = vmul.f32 %v210, 0.5
    %v213 = vmul.f32 %v211, 0.5
    %v214 = vmul.f32 %v210, 0.70710677
    %v215 = vmul.f32 %v211, 0.70710677
    %v216 = verf.f32.pop %v214
    %v217 = verf.f32.pop %v215
    %v218 = vadd.f32 %v216, 1.0
    %v219 = vadd.f32 %v217, 1.0
    %v220 = vmul.f32 %v212, %v218
    %v221 = vmul.f32 %v213, %v219
    %v222 = vld [vmem:[%s6] sm:$0x1]
    %v224 = vlaneseq
    %v225 = vshrl.u32 %v224, 7
    %v226 = vsub.s32 0, %v225
    %v227 = vrot.slane %v222, %v226
    %v229 = vmul.f32 %v220, %v227
    %v230 = vmul.f32 %v221, %v227
    %v231 = vsel %vm81, %v229, 0.0
    %232 = vadd.xlane.f32.xlu0 %v231
    %v233 = vpop.xlane.xlu0 %232
    %v234 = vsel %vm81, %v230, 0.0
    %235 = vadd.xlane.f32.xlu0 %v234
    %v236 = vpop.xlane.xlu0 %235
    %v237 = vld [vmem:[#allocation5] sm:$0x1]
    %v238 = vld [vmem:[#allocation5 + $0x1] sm:$0x1]
    %vm239 = vcmp.ne.f32.partialorder %v237, 0.0
    %vm240 = vcmp.ne.f32.partialorder %v238, 0.0
    %v243 = vlaneseq
    %v244 = vshrl.u32 %v243, 7
    %v245 = vsub.s32 0, %v244
    %v246 = vrot.slane %v233, %v245
    %v247 = vlaneseq
    %v248 = vshrl.u32 %v247, 7
    %v249 = vsub.s32 1, %v248
    %v250 = vrot.slane %v233, %v249
    %v251 = vlaneseq
    %v252 = vshrl.u32 %v251, 7
    %v253 = vsub.s32 2, %v252
    %v254 = vrot.slane %v233, %v253
    %v255 = vlaneseq
    %v256 = vshrl.u32 %v255, 7
    %v257 = vsub.s32 3, %v256
    %v258 = vrot.slane %v233, %v257
    %v259 = vlaneseq
    %v260 = vshrl.u32 %v259, 7
    %v261 = vsub.s32 4, %v260
    %v262 = vrot.slane %v233, %v261
    %v263 = vlaneseq
    %v264 = vshrl.u32 %v263, 7
    %v265 = vsub.s32 5, %v264
    %v266 = vrot.slane %v233, %v265
    %v267 = vlaneseq
    %v268 = vshrl.u32 %v267, 7
    %v269 = vsub.s32 6, %v268
    %v270 = vrot.slane %v233, %v269
    %v271 = vlaneseq
    %v272 = vshrl.u32 %v271, 7
    %v273 = vsub.s32 7, %v272
    %v274 = vrot.slane %v233, %v273
    %v275 = vlaneseq
    %v276 = vshrl.u32 %v275, 7
    %v277 = vsub.s32 0, %v276
    %v278 = vrot.slane %v236, %v277
    %v279 = vlaneseq
    %v280 = vshrl.u32 %v279, 7
    %v281 = vsub.s32 1, %v280
    %v282 = vrot.slane %v236, %v281
    %v283 = vlaneseq
    %v284 = vshrl.u32 %v283, 7
    %v285 = vsub.s32 2, %v284
    %v286 = vrot.slane %v236, %v285
    %v287 = vlaneseq
    %v288 = vshrl.u32 %v287, 7
    %v289 = vsub.s32 3, %v288
    %v290 = vrot.slane %v236, %v289
    %v291 = vlaneseq
    %v292 = vshrl.u32 %v291, 7
    %v293 = vsub.s32 4, %v292
    %v294 = vrot.slane %v236, %v293
    %v295 = vlaneseq
    %v296 = vshrl.u32 %v295, 7
    %v297 = vsub.s32 5, %v296
    %v298 = vrot.slane %v236, %v297
    %v299 = vlaneseq
    %v300 = vshrl.u32 %v299, 7
    %v301 = vsub.s32 6, %v300
    %v302 = vrot.slane %v236, %v301
    %v303 = vlaneseq
    %v304 = vshrl.u32 %v303, 7
    %v305 = vsub.s32 7, %v304
    %v306 = vrot.slane %v236, %v305
    %v307 = vcombine.low %v246, %v250
    %v308 = vcombine.low %v254, %v258
    %v309 = vcombine.low %v262, %v266
    %v310 = vcombine.low %v270, %v274
    %v312 = vunpack.c.l.s4 1966171168
    %v313 = vunpack.c.0.s8 %v312
    %v314 = vlaneseq
    %v315 = vshrl.u32 %v314, 7
    %v316 = vsub.s32 %v313, %v315
    %v317 = vrot.slane %v307, %v316
    %v319 = vunpack.c.l.s4 1966171168
    %v320 = vunpack.c.0.s8 %v319
    %v321 = vlaneseq
    %v322 = vshrl.u32 %v321, 7
    %v323 = vsub.s32 %v320, %v322
    %v324 = vrot.slane %v308, %v323
    %v326 = vunpack.c.l.s4 1966171168
    %v327 = vunpack.c.0.s8 %v326
    %v328 = vlaneseq
    %v329 = vshrl.u32 %v328, 7
    %v330 = vsub.s32 %v327, %v329
    %v331 = vrot.slane %v309, %v330
    %v333 = vunpack.c.l.s4 1966171168
    %v334 = vunpack.c.0.s8 %v333
    %v335 = vlaneseq
    %v336 = vshrl.u32 %v335, 7
    %v337 = vsub.s32 %v334, %v336
    %v338 = vrot.slane %v310, %v337
    %v339 = vcombine.low %v317, %v324
    %v340 = vcombine.low %v331, %v338
    %v342 = vunpack.c.l.s4 1966171168
    %v343 = vunpack.c.0.s8 %v342
    %v344 = vlaneseq
    %v345 = vshrl.u32 %v344, 7
    %v346 = vsub.s32 %v343, %v345
    %v347 = vrot.slane %v339, %v346
    %v349 = vunpack.c.l.s4 1966171168
    %v350 = vunpack.c.0.s8 %v349
    %v351 = vlaneseq
    %v352 = vshrl.u32 %v351, 7
    %v353 = vsub.s32 %v350, %v352
    %v354 = vrot.slane %v340, %v353
    %v355 = vcombine.low %v347, %v354
    %v356 = vcombine.low %v278, %v282
    %v357 = vcombine.low %v286, %v290
    %v358 = vcombine.low %v294, %v298
    %v359 = vcombine.low %v302, %v306
    %v361 = vunpack.c.l.s4 1966171168
    %v362 = vunpack.c.0.s8 %v361
    %v363 = vlaneseq
    %v364 = vshrl.u32 %v363, 7
    %v365 = vsub.s32 %v362, %v364
    %v366 = vrot.slane %v356, %v365
    %v368 = vunpack.c.l.s4 1966171168
    %v369 = vunpack.c.0.s8 %v368
    %v370 = vlaneseq
    %v371 = vshrl.u32 %v370, 7
    %v372 = vsub.s32 %v369, %v371
    %v373 = vrot.slane %v357, %v372
    %v375 = vunpack.c.l.s4 1966171168
    %v376 = vunpack.c.0.s8 %v375
    %v377 = vlaneseq
    %v378 = vshrl.u32 %v377, 7
    %v379 = vsub.s32 %v376, %v378
    %v380 = vrot.slane %v358, %v379
    %v382 = vunpack.c.l.s4 1966171168
    %v383 = vunpack.c.0.s8 %v382
    %v384 = vlaneseq
    %v385 = vshrl.u32 %v384, 7
    %v386 = vsub.s32 %v383, %v385
    %v387 = vrot.slane %v359, %v386
    %v388 = vcombine.low %v366, %v373
    %v389 = vcombine.low %v380, %v387
    %v391 = vunpack.c.l.s4 1966171168
    %v392 = vunpack.c.0.s8 %v391
    %v393 = vlaneseq
    %v394 = vshrl.u32 %v393, 7
    %v395 = vsub.s32 %v392, %v394
    %v396 = vrot.slane %v388, %v395
    %v398 = vunpack.c.l.s4 1966171168
    %v399 = vunpack.c.0.s8 %v398
    %v400 = vlaneseq
    %v401 = vshrl.u32 %v400, 7
    %v402 = vsub.s32 %v399, %v401
    %v403 = vrot.slane %v389, %v402
    %v404 = vcombine.low %v396, %v403
    %405 = vset.pattern.permute.xlu0 0
    %406 = vperm.xlu0 %405, %v355
    %v407 = vpop.permute.xlu0 %406
    %408 = vset.pattern.permute.xlu0 0
    %409 = vperm.xlu0 %408, %v404
    %v410 = vpop.permute.xlu0 %409
    %v411 = vlaneseq
    %v412 = vand.u32 %v411, 127
    %v413 = vlaneseq
    %v414 = vshrl.u32 %v413, 7
    %v415 = vsub.s32 %v412, %v414
    %v416 = vrot.slane %v407, %v415
    %v417 = vlaneseq
    %v418 = vshrl.u32 %v417, 7
    %v419 = vsub.s32 %v412, %v418
    %v420 = vrot.slane %v410, %v419
    %v422 = vunpack.c.l.s4 1966171168
    %v423 = vunpack.c.0.s8 %v422
    %v424 = vlaneseq
    %v425 = vshrl.u32 %v424, 7
    %v426 = vsub.s32 %v423, %v425
    %v427 = vrot.slane %v416, %v426
    %v429 = vunpack.c.l.s4 1966171168
    %v430 = vunpack.c.0.s8 %v429
    %v431 = vlaneseq
    %v432 = vshrl.u32 %v431, 7
    %v433 = vsub.s32 %v430, %v432
    %v434 = vrot.slane %v427, %v433
    %v436 = vunpack.c.l.s4 1966171168
    %v437 = vunpack.c.0.s8 %v436
    %v438 = vlaneseq
    %v439 = vshrl.u32 %v438, 7
    %v440 = vsub.s32 %v437, %v439
    %v441 = vrot.slane %v420, %v440
    %v443 = vunpack.c.l.s4 1966171168
    %v444 = vunpack.c.0.s8 %v443
    %v445 = vlaneseq
    %v446 = vshrl.u32 %v445, 7
    %v447 = vsub.s32 %v444, %v446
    %v448 = vrot.slane %v441, %v447
    %v451 = vsel %vm239, %v434, -inf
    %v452 = vsel %vm240, %v448, -inf
    %v455 = vcombine.low %v451, %v452
    %v457 = vunpack.c.l.s4 1966171168
    %v458 = vunpack.c.0.s8 %v457
    %v459 = vlaneseq
    %v460 = vshrl.u32 %v459, 7
    %v461 = vsub.s32 %v458, %v460
    %v462 = vrot.slane %v455, %v461
    %v464 = vunpack.c.l.s4 1966171168
    %v465 = vunpack.c.0.s8 %v464
    %v466 = vlaneseq
    %v467 = vshrl.u32 %v466, 7
    %v468 = vsub.s32 %v465, %v467
    %v469 = vrot.slane %v462, %v468
    %vm471 = vcmask 58368
    %v472 = vsel %vm471, %v469, -inf
    %473 = vmax.xlane.f32.xlu0 %v472
    %v474 = vpop.xlane.xlu0 %473
    %v476 = vlaneseq
    %v477 = vshrl.u32 %v476, 7
    %v478 = vsub.s32 0, %v477
    %v479 = vrot.slane %v474, %v478
    %v480 = vlaneseq
    %v481 = vshrl.u32 %v480, 7
    %v482 = vsub.s32 1, %v481
    %v483 = vrot.slane %v474, %v482
    %v486 = vsub.f32 %v451, %v479
    %v487 = vsub.f32 %v452, %v483
    %v488 = vmul.f32 %v486, 1.442695
    %v489 = vpow.pop %v488
    %v490 = vmul.f32 %v487, 1.442695
    %v491 = vpow.pop %v490
    %v494 = vcombine.low %v489, %v491
    %v496 = vunpack.c.l.s4 1966171168
    %v497 = vunpack.c.0.s8 %v496
    %v498 = vlaneseq
    %v499 = vshrl.u32 %v498, 7
    %v500 = vsub.s32 %v497, %v499
    %v501 = vrot.slane %v494, %v500
    %v503 = vunpack.c.l.s4 1966171168
    %v504 = vunpack.c.0.s8 %v503
    %v505 = vlaneseq
    %v506 = vshrl.u32 %v505, 7
    %v507 = vsub.s32 %v504, %v506
    %v508 = vrot.slane %v501, %v507
    %v510 = vsel %vm471, %v508, 0.0
    %511 = vadd.xlane.f32.xlu0 %v510
    %v512 = vpop.xlane.xlu0 %511
    %v514 = vlaneseq
    %v515 = vshrl.u32 %v514, 7
    %v516 = vsub.s32 0, %v515
    %v517 = vrot.slane %v512, %v516
    %v518 = vlaneseq
    %v519 = vshrl.u32 %v518, 7
    %v520 = vsub.s32 1, %v519
    %v521 = vrot.slane %v512, %v520
    %v524 = vrcp.pop %v517
    %v525 = vmul.f32 %v489, %v524
    %v526 = vrcp.pop %v521
    %v527 = vmul.f32 %v491, %v526
    %v528 = vlaneseq
    %v529 = vshrl.u32 %v528, 7
    %v530 = vsub.s32 0, %v529
    %v531 = vrot.slane %v525, %v530
    %533 = vbcast.lane.b32.xlu0 %v531, 256
    %v534 = vpop.permute.xlu0 %533
    %v535 = vlaneseq
    %v536 = vshrl.u32 %v535, 7
    %v537 = vsub.s32 0, %v536
    %v538 = vrot.slane %v527, %v537
    %540 = vbcast.lane.b32.xlu0 %v538, 256
    %v541 = vpop.permute.xlu0 %540
    %v542 = vmul.f32 %v534, %v68
    %v543 = vmul.f32 %v541, %v69
    %v544 = vsel %vm81, %v542, 0.0
    %v545 = vrot.slane %v544, 4
    %v546 = vadd.f32 %v544, %v545
    %v547 = vrot.slane %v546, 2
    %v548 = vadd.f32 %v546, %v547
    %v549 = vrot.slane %v548, 1
    %v550 = vadd.f32 %v548, %v549
    %v551 = vsel %vm81, %v543, 0.0
    %v552 = vrot.slane %v551, 4
    %v553 = vadd.f32 %v551, %v552
    %v554 = vrot.slane %v553, 2
    %v555 = vadd.f32 %v553, %v554
    %v556 = vrot.slane %v555, 1
    %v557 = vadd.f32 %v555, %v556
    %vm560 = vcmask 1041409
    %v561 = vsel %vm560, %v557, %v550
    %vm563 = vcmask 254976
    %564 = vst.msk [vmem:[#allocation8] sm:$0x3] %vm563, %v561
    // Predicated region
    $region42: #{tpu_custom_call.1} parent=1 // pred_check
      _
    $region43: #{tpu_custom_call.1} parent=1 // pred_check_branch
      %566 = sbr.rel (0) target = $region45
    $region44: #{tpu_custom_call.1} parent=1 // pred_region
      %s568 = ssub.s32 32, 32
      %569 = vsyncadd [#allocation4], %s568
      %s571 = sshll.u32 [#allocation8], 4
      %s572 = int_to_ptr.vmem [resolvable:$true] %s571
      %574 = dma.vmem_to_hbm [thread:$0]  %s572, 32, %s7, [#allocation4]
    $region45: #{tpu_custom_call.1} parent=1 // pred_fallthru
      _
    // Predicated region
    $region46: #{tpu_custom_call.1} parent=1 // pred_check
      _
    $region47: #{tpu_custom_call.1} parent=1 // pred_check_branch
      %576 = sbr.rel (0) target = $region49
    $region48: #{tpu_custom_call.1} parent=1 // pred_region
      %577 = dma.done [#allocation4], 32
    $region49: #{tpu_custom_call.1} parent=1 // pred_fallthru
      _
    %578 = vsyncpa [#allocation3], 1
    %579 = vsyncpa [#allocation6], 1
    %580 = vsyncpa [#allocation4], 1

</llo_original>
